<compile_context>
chip_gen: v6e
topology: v6e:2x2x1
jax: 0.10.0
libtpu: 0.0.40
codegen_flags: <defaults>
</compile_context>

<pallas_src>
import functools

import numpy as np

import jax
import jax.numpy as jnp
from jax import lax
from jax.experimental import pallas as pl
from jax.experimental.pallas import tpu as pltpu

NEG = -1.0e30  # finite "-inf" sentinel: avoids inf/NaN hazards in the EUP exp/log path


def _round_up(x, m):
    return ((x + m - 1) // m) * m


# ----------------------------------------------------------------------------- kernel
def _make_ctc_kernel(Sx):
    """CTC forward (alpha) recursion for one batch element.

    Refs: in_lens/tgt_lens (scalar-prefetch, SMEM), lp (1,Tp,Cp), onehot (1,Cp,Sx),
    skip (1,1,Sx), out (1,1,128), scratch g (Tp,Sx).
    """

    def kernel(in_lens_ref, tgt_lens_ref, lp_ref, oh_ref, skip_ref, o_ref, g_ref):
        b = pl.program_id(0)
        t_in = in_lens_ref[b]        # input (prediction) length of this sample
        s_tgt = tgt_lens_ref[b]      # target length of this sample

        # Gather log-probs at extended-label positions with a single MXU matmul:
        #   g[t, s] = log_probs[t, ext_label[s]]
        g_ref[...] = jnp.dot(lp_ref[0], oh_ref[0],
                             preferred_element_type=jnp.float32)

        lane = lax.broadcasted_iota(jnp.int32, (1, Sx), 1)
        skip_ok = skip_ref[0] > 0.5                      # (1, Sx) skip-transition mask
        neg = jnp.full((1, Sx), NEG, jnp.float32)

        def lse3(x0, x1, x2):
            m = jnp.maximum(jnp.maximum(x0, x1), x2)
            e = (jnp.exp(jnp.maximum(x0 - m, -80.0))
                 + jnp.exp(jnp.maximum(x1 - m, -80.0))
                 + jnp.exp(jnp.maximum(x2 - m, -80.0)))
            return m + jnp.log(e)

        # t = 0 init: alpha[0] = g[0,0] (blank); alpha[1] = g[0,1] if target non-empty.
        n_init = jnp.where(s_tgt > 0, 2, 1)
        alpha0 = jnp.where(lane < n_init, g_ref[0:1, :], neg)

        def step(t, alpha):
            # alpha[s-1] and alpha[s-2] via lane rotation + wrap masking
            a1 = jnp.where(lane >= 1, pltpu.roll(alpha, 1, 1), neg)
            a2 = jnp.where((lane >= 2) & skip_ok, pltpu.roll(alpha, 2, 1), neg)
            return g_ref[pl.ds(t, 1), :] + lse3(alpha, a1, a2)

        alpha = lax.fori_loop(1, t_in, step, alpha0)     # exactly input_length steps

        # log-likelihood = logsumexp(alpha[2*S_n], alpha[2*S_n - 1])
        last = 2 * s_tgt
        fin = (lane == last) | ((lane == last - 1) & (s_tgt > 0))
        vals = jnp.where(fin, alpha, neg)
        m = jnp.max(vals, axis=1, keepdims=True)                             # (1, 1)
        e = jnp.sum(jnp.exp(jnp.maximum(vals - m, -80.0)), axis=1, keepdims=True)
        ll = m + jnp.log(e)                                                  # (1, 1)
        o_ref[0] = jnp.broadcast_to(-ll, (1, 128)).astype(jnp.float32)       # lane-dense

    return kernel


def _ctc_nll_pallas(lp, onehot, skip, input_lengths, target_lengths):
    """Per-sample CTC negative log-likelihood (reduction='none')."""
    N, Tp, Cp = lp.shape
    Sx = onehot.shape[-1]
    out = pl.pallas_call(
        _make_ctc_kernel(Sx),
        out_shape=jax.ShapeDtypeStruct((N, 1, 128), jnp.float32),
        grid_spec=pltpu.PrefetchScalarGridSpec(
            num_scalar_prefetch=2,
            grid=(N,),
            in_specs=[
                pl.BlockSpec((1, Tp, Cp), lambda b, il, tl: (b, 0, 0)),
                pl.BlockSpec((1, Cp, Sx), lambda b, il, tl: (b, 0, 0)),
                pl.BlockSpec((1, 1, Sx), lambda b, il, tl: (b, 0, 0)),
            ],
            out_specs=pl.BlockSpec((1, 1, 128), lambda b, il, tl: (b, 0, 0)),
            scratch_shapes=[pltpu.VMEM((Tp, Sx), jnp.float32)],
        ),
        compiler_params=pltpu.CompilerParams(
            dimension_semantics=("parallel",)),
    )(input_lengths, target_lengths, lp, onehot, skip)
    return out[:, 0, 0]


# ------------------------------------------------------------------------------- glue
@functools.partial(jax.jit, static_argnames=("blank",))
def custom_ctc_loss(logits, labels, prediction_sizes, target_sizes, blank=0):
    """CustomCTCLoss.forward.

    logits: (T, N, C) log-probabilities over dim 2 (as expected by nn.CTCLoss).
    labels: (N, S) padded targets; prediction_sizes/target_sizes: (N,) lengths.
    Returns nn.CTCLoss(blank=0, reduction='mean', zero_infinity=True) + sanitize().
    """
    T, N, C = logits.shape
    if labels.shape[1] == 0:
        labels = jnp.zeros((N, 1), jnp.int32)
    labels = labels.astype(jnp.int32)
    S = labels.shape[1]
    in_lens = prediction_sizes.astype(jnp.int32)
    tgt_lens = target_sizes.astype(jnp.int32)

    Tp = _round_up(max(T, 8), 8)
    Cp = _round_up(max(C, 128), 128)
    Sx = _round_up(2 * S + 1, 128)

    # (T, N, C) -> (N, Tp, Cp), zero padded (padding never selected by the one-hot)
    lp = jnp.transpose(logits.astype(jnp.float32), (1, 0, 2))
    lp = jnp.pad(lp, ((0, 0), (0, Tp - T), (0, Cp - C)))

    # Extended label sequence l' = [blank, l1, blank, ..., lS, blank]; per-sample valid
    # length is 2*target_len+1.  One-hot (zeroed beyond the valid length) feeds the
    # in-kernel gather matmul; `skip` marks positions where the s-2 transition is legal.
    s_idx = jnp.arange(Sx, dtype=jnp.int32)
    valid = s_idx[None, :] < (2 * tgt_lens[:, None] + 1)              # (N, Sx)
    is_lab = ((s_idx % 2) == 1)[None, :] & valid
    cur = labels[:, jnp.clip((s_idx - 1) // 2, 0, S - 1)]             # (N, Sx)
    prev = labels[:, jnp.clip((s_idx - 3) // 2, 0, S - 1)]
    ext = jnp.where(is_lab, cur, blank)
    onehot = jax.nn.one_hot(ext, Cp, dtype=jnp.float32) * valid[..., None].astype(jnp.float32)
    onehot = jnp.transpose(onehot, (0, 2, 1))                         # (N, Cp, Sx)
    skip = (is_lab & (s_idx[None, :] >= 3) & (cur != prev)).astype(jnp.float32)
    skip = skip.reshape(N, 1, Sx)

    nll = _ctc_nll_pallas(lp, onehot, skip, in_lens, tgt_lens)        # (N,)

    # zero_infinity=True: unreachable alignments (>=1e29 sentinel) / non-finite -> 0
    nll = jnp.where(jnp.isfinite(nll) & (nll < 1e29), nll, 0.0)
    # reduction='mean': divide by target lengths (clamped to 1), then batch mean
    loss = jnp.mean(nll / jnp.maximum(tgt_lens.astype(jnp.float32), 1.0))
    # sanitize(): inf / NaN total loss -> 0
    return jnp.where(jnp.isfinite(loss), loss, jnp.zeros_like(loss))


# -------------------------------------------------------------------- pure reference
def _ctc_loss_ref(logits, labels, prediction_sizes, target_sizes, blank=0):
    """NumPy reference of nn.CTCLoss(zero_infinity=True, reduction='mean') + sanitize."""
    lp_all = np.asarray(logits, np.float64)
    labels = np.asarray(labels)
    in_lens = np.asarray(prediction_sizes)
    tgt_lens = np.asarray(target_sizes)
    T, N, C = lp_all.shape
    nll = np.zeros((N,), np.float64)
    for n in range(N):
        Tn, Sn = int(in_lens[n]), int(tgt_lens[n])
        ext = [blank]
        for k in range(Sn):
            ext += [int(labels[n, k]), blank]
        L = len(ext)
        lp = lp_all[:, n, :]
        alpha = np.full((L,), -np.inf)
        alpha[0] = lp[0, ext[0]]
        if Sn > 0:
            alpha[1] = lp[0, ext[1]]
        for t in range(1, Tn):
            new = np.full((L,), -np.inf)
            for s in range(L):
                cands = [alpha[s]]
                if s >= 1:
                    cands.append(alpha[s - 1])
                if s >= 2 and ext[s] != blank and ext[s] != ext[s - 2]:
                    cands.append(alpha[s - 2])
                m = max(cands)
                if m == -np.inf:
                    new[s] = -np.inf
                else:
                    new[s] = lp[t, ext[s]] + m + np.log(sum(np.exp(c - m) for c in cands))
            alpha = new
        fin = [alpha[L - 1]] + ([alpha[L - 2]] if Sn > 0 else [])
        m = max(fin)
        ll = -np.inf if m == -np.inf else m + np.log(sum(np.exp(c - m) for c in fin))
        nll[n] = -ll
    nll = np.where(np.isfinite(nll), nll, 0.0)
    loss = float(np.mean(nll / np.maximum(tgt_lens.astype(np.float64), 1.0)))
    return loss if np.isfinite(loss) else 0.0


# -------------------------------------------------------------------------------- main
if __name__ == "__main__":
    key = jax.random.PRNGKey(0)
    k_logit, k_lab = jax.random.split(key)

    T, B, C, S = 16, 4, 11, 5         # time, batch, classes (blank = 0), max target len
    raw = jax.random.normal(k_logit, (T, B, C), jnp.float32)
    logits = jax.nn.log_softmax(raw, axis=2)       # "T x b x h -> Softmax on dimension 2"
    labels = jax.random.randint(k_lab, (B, S), 1, C, dtype=jnp.int32)  # targets exclude blank
    prediction_sizes = jnp.array([16, 14, 16, 12], jnp.int32)
    target_sizes = jnp.array([5, 3, 4, 2], jnp.int32)

    loss = custom_ctc_loss(logits, labels, prediction_sizes, target_sizes)
    loss = jax.block_until_ready(loss)

    ref = _ctc_loss_ref(logits, labels, prediction_sizes, target_sizes)
    assert bool(jnp.isfinite(loss)), loss
    assert abs(float(loss) - ref) <= 1e-3 + 1e-3 * abs(ref), (float(loss), ref)
    print("KERNEL_OK")
</pallas_src>

<mosaic_0001>
module attributes {stable_mosaic.version = 11 : i64} {
  func.func @kernel(%arg0: i32, %arg1: memref<4xi32, #tpu.memory_space<smem>>, %arg2: memref<4xi32, #tpu.memory_space<smem>>, %arg3: memref<1x16x128xf32, #tpu.memory_space<vmem>>, %arg4: memref<1x128x128xf32, #tpu.memory_space<vmem>>, %arg5: memref<1x1x128xf32, #tpu.memory_space<vmem>>, %arg6: memref<1x1x128xf32, #tpu.memory_space<vmem>>, %arg7: memref<16x128xf32, #tpu.memory_space<vmem>>) attributes {dimension_semantics = [#tpu.dimension_semantics<parallel>], iteration_bounds = array<i64: 4>, scalar_prefetch = 2 : i64, scratch_operands = 1 : i64, tpu.core_type = #tpu.core_type<tc>, window_params = [{transform_indices = @transform_0, window_bounds = array<i64: 1, 16, 128>}, {transform_indices = @transform_1, window_bounds = array<i64: 1, 128, 128>}, {transform_indices = @transform_2, window_bounds = array<i64: 1, 1, 128>}, {transform_indices = @transform_3, window_bounds = array<i64: 1, 1, 128>}]} {
    %0 = arith.index_cast %arg0 : i32 to index
    %1 = memref.load %arg1[%0] : memref<4xi32, #tpu.memory_space<smem>>
    %2 = arith.index_cast %arg0 : i32 to index
    %3 = memref.load %arg2[%2] : memref<4xi32, #tpu.memory_space<smem>>
    %c0 = arith.constant 0 : index
    %c0_0 = arith.constant 0 : index
    %c0_1 = arith.constant 0 : index
    %4 = vector.load %arg3[%c0, %c0_0, %c0_1] : memref<1x16x128xf32, #tpu.memory_space<vmem>>, vector<1x16x128xf32>
    %5 = vector.shape_cast %4 : vector<1x16x128xf32> to vector<16x128xf32>
    %c0_2 = arith.constant 0 : index
    %c0_3 = arith.constant 0 : index
    %c0_4 = arith.constant 0 : index
    %6 = vector.load %arg4[%c0_2, %c0_3, %c0_4] : memref<1x128x128xf32, #tpu.memory_space<vmem>>, vector<1x128x128xf32>
    %7 = vector.shape_cast %6 : vector<1x128x128xf32> to vector<128x128xf32>
    %cst = arith.constant dense<0.000000e+00> : vector<16x128xf32>
    %8 = tpu.matmul %5, %7, %cst {dimension_numbers = #tpu.dot_dimension_numbers<[1], [0], [0], [1], [0, 0, 1, 1], [], []>} : vector<16x128xf32>, vector<128x128xf32>, vector<16x128xf32> -> vector<16x128xf32>
    %c0_5 = arith.constant 0 : index
    %c0_6 = arith.constant 0 : index
    %9 = vector.load %arg7[%c0_5, %c0_6] : memref<16x128xf32, #tpu.memory_space<vmem>>, vector<16x128xf32>
    tpu.vector_store %arg7[%c0_5, %c0_6], %8 {strides = array<i32>} : memref<16x128xf32, #tpu.memory_space<vmem>>, vector<16x128xf32>,
    %10 = tpu.iota {dimensions = array<i32: 1>} : vector<1x128xi32>
    %c0_7 = arith.constant 0 : index
    %c0_8 = arith.constant 0 : index
    %c0_9 = arith.constant 0 : index
    %11 = vector.load %arg5[%c0_7, %c0_8, %c0_9] : memref<1x1x128xf32, #tpu.memory_space<vmem>>, vector<1x1x128xf32>
    %12 = vector.shape_cast %11 : vector<1x1x128xf32> to vector<1x128xf32>
    %cst_10 = arith.constant 5.000000e-01 : f32
    %13 = vector.broadcast %cst_10 : f32 to vector<1x128xf32>
    %14 = arith.cmpf ogt, %12, %13 : vector<1x128xf32>
    %cst_11 = arith.constant -1.000000e+30 : f32
    %15 = vector.broadcast %cst_11 : f32 to vector<1x128xf32>
    %c0_i32 = arith.constant 0 : i32
    %16 = arith.cmpi sgt, %3, %c0_i32 : i32
    %c2_i32 = arith.constant 2 : i32
    %c1_i32 = arith.constant 1 : i32
    %17 = arith.select %16, %c2_i32, %c1_i32 : i32
    %18 = vector.broadcast %17 : i32 to vector<1x128xi32>
    %19 = arith.cmpi slt, %10, %18 : vector<1x128xi32>
    %c0_12 = arith.constant 0 : index
    %c0_13 = arith.constant 0 : index
    %20 = vector.load %arg7[%c0_12, %c0_13] : memref<16x128xf32, #tpu.memory_space<vmem>>, vector<1x128xf32>
    %21 = arith.select %19, %20, %15 : vector<1x128xi1>, vector<1x128xf32>
    %c1_i32_14 = arith.constant 1 : i32
    %22 = arith.subi %1, %c1_i32_14 : i32
    %23 = arith.addi %c1_i32_14, %22 : i32
    %c1_i32_15 = arith.constant 1 : i32
    %24 = scf.for %arg8 = %c1_i32_14 to %23 step %c1_i32_15 iter_args(%arg9 = %21) -> (vector<1x128xf32>)  : i32 {
      %c1_i32_26 = arith.constant 1 : i32
      %54 = vector.broadcast %c1_i32_26 : i32 to vector<1x128xi32>
      %55 = arith.cmpi sge, %10, %54 : vector<1x128xi32>
      %c1_i32_27 = arith.constant 1 : i32
      %56 = tpu.dynamic_rotate %arg9 by %c1_i32_27 dim 1 : vector<1x128xf32>, i32 -> vector<1x128xf32>
      %57 = arith.select %55, %56, %15 : vector<1x128xi1>, vector<1x128xf32>
      %c2_i32_28 = arith.constant 2 : i32
      %58 = vector.broadcast %c2_i32_28 : i32 to vector<1x128xi32>
      %59 = arith.cmpi sge, %10, %58 : vector<1x128xi32>
      %60 = arith.andi %59, %14 : vector<1x128xi1>
      %c2_i32_29 = arith.constant 2 : i32
      %61 = tpu.dynamic_rotate %arg9 by %c2_i32_29 dim 1 : vector<1x128xf32>, i32 -> vector<1x128xf32>
      %62 = arith.select %60, %61, %15 : vector<1x128xi1>, vector<1x128xf32>
      %63 = arith.index_cast %arg8 : i32 to index
      %c0_30 = arith.constant 0 : index
      %64 = vector.load %arg7[%63, %c0_30] : memref<16x128xf32, #tpu.memory_space<vmem>>, vector<1x128xf32>
      %65 = arith.maximumf %arg9, %57 : vector<1x128xf32>
      %66 = arith.maximumf %65, %62 : vector<1x128xf32>
      %67 = arith.subf %arg9, %66 : vector<1x128xf32>
      %cst_31 = arith.constant -8.000000e+01 : f32
      %68 = vector.broadcast %cst_31 : f32 to vector<1x128xf32>
      %69 = arith.maximumf %67, %68 : vector<1x128xf32>
      %70 = math.exp %69 : vector<1x128xf32>
      %71 = arith.subf %57, %66 : vector<1x128xf32>
      %cst_32 = arith.constant -8.000000e+01 : f32
      %72 = vector.broadcast %cst_32 : f32 to vector<1x128xf32>
      %73 = arith.maximumf %71, %72 : vector<1x128xf32>
      %74 = math.exp %73 : vector<1x128xf32>
      %75 = arith.addf %70, %74 : vector<1x128xf32>
      %76 = arith.subf %62, %66 : vector<1x128xf32>
      %cst_33 = arith.constant -8.000000e+01 : f32
      %77 = vector.broadcast %cst_33 : f32 to vector<1x128xf32>
      %78 = arith.maximumf %76, %77 : vector<1x128xf32>
      %79 = math.exp %78 : vector<1x128xf32>
      %80 = arith.addf %75, %79 : vector<1x128xf32>
      %81 = math.log %80 : vector<1x128xf32>
      %82 = arith.addf %66, %81 : vector<1x128xf32>
      %83 = arith.addf %64, %82 : vector<1x128xf32>
      scf.yield %83 : vector<1x128xf32>
    }
    %c2_i32_16 = arith.constant 2 : i32
    %25 = arith.muli %c2_i32_16, %3 : i32
    %26 = vector.broadcast %25 : i32 to vector<1x128xi32>
    %27 = arith.cmpi eq, %10, %26 : vector<1x128xi32>
    %c1_i32_17 = arith.constant 1 : i32
    %28 = arith.subi %25, %c1_i32_17 : i32
    %29 = vector.broadcast %28 : i32 to vector<1x128xi32>
    %30 = arith.cmpi eq, %10, %29 : vector<1x128xi32>
    %c0_i32_18 = arith.constant 0 : i32
    %31 = arith.cmpi sgt, %3, %c0_i32_18 : i32
    %32 = vector.broadcast %31 : i1 to vector<1x128xi1>
    %33 = arith.andi %30, %32 : vector<1x128xi1>
    %34 = arith.ori %27, %33 : vector<1x128xi1>
    %35 = arith.select %34, %24, %15 : vector<1x128xi1>, vector<1x128xf32>
    %cst_19 = arith.constant dense<0xFF800000> : vector<1xf32>
    %36 = vector.multi_reduction <maximumf>, %35, %cst_19 [1] : vector<1x128xf32> to vector<1xf32>
    %37 = vector.shape_cast %36 : vector<1xf32> to vector<1x1xf32>
    %38 = vector.broadcast %37 : vector<1x1xf32> to vector<1x128xf32>
    %39 = arith.subf %35, %38 : vector<1x128xf32>
    %cst_20 = arith.constant -8.000000e+01 : f32
    %40 = vector.broadcast %cst_20 : f32 to vector<1x128xf32>
    %41 = arith.maximumf %39, %40 : vector<1x128xf32>
    %42 = math.exp %41 : vector<1x128xf32>
    %cst_21 = arith.constant dense<0.000000e+00> : vector<1xf32>
    %43 = vector.multi_reduction <add>, %42, %cst_21 [1] : vector<1x128xf32> to vector<1xf32>
    %44 = vector.shape_cast %43 : vector<1xf32> to vector<1x1xf32>
    %45 = math.log %44 : vector<1x1xf32>
    %46 = arith.addf %37, %45 : vector<1x1xf32>
    %cst_22 = arith.constant 0.000000e+00 : f32
    %47 = vector.broadcast %cst_22 : f32 to vector<1x1xf32>
    %48 = arith.subf %47, %46 : vector<1x1xf32>
    %49 = vector.shape_cast %48 : vector<1x1xf32> to vector<1x1xf32>
    %50 = vector.broadcast %49 : vector<1x1xf32> to vector<1x128xf32>
    %c0_23 = arith.constant 0 : index
    %c0_24 = arith.constant 0 : index
    %c0_25 = arith.constant 0 : index
    %51 = vector.load %arg6[%c0_23, %c0_24, %c0_25] : memref<1x1x128xf32, #tpu.memory_space<vmem>>, vector<1x1x128xf32>
    %52 = vector.shape_cast %51 : vector<1x1x128xf32> to vector<1x128xf32>
    %53 = vector.shape_cast %50 : vector<1x128xf32> to vector<1x1x128xf32>
    tpu.vector_store %arg6[%c0_23, %c0_24, %c0_25], %53 {strides = array<i32>} : memref<1x1x128xf32, #tpu.memory_space<vmem>>, vector<1x1x128xf32>,
    return
  }
  func.func @transform_0(%arg0: i32, %arg1: memref<4xi32, #tpu.memory_space<smem>>, %arg2: memref<4xi32, #tpu.memory_space<smem>>) -> (i32, i32, i32) {
    %c0_i32 = arith.constant 0 : i32
    %c0_i32_0 = arith.constant 0 : i32
    %c0_i32_1 = arith.constant 0 : i32
    return %arg0, %c0_i32, %c0_i32_0 : i32, i32, i32
  }
  func.func @transform_1(%arg0: i32, %arg1: memref<4xi32, #tpu.memory_space<smem>>, %arg2: memref<4xi32, #tpu.memory_space<smem>>) -> (i32, i32, i32) {
    %c0_i32 = arith.constant 0 : i32
    %c0_i32_0 = arith.constant 0 : i32
    %c0_i32_1 = arith.constant 0 : i32
    return %arg0, %c0_i32, %c0_i32_0 : i32, i32, i32
  }
  func.func @transform_2(%arg0: i32, %arg1: memref<4xi32, #tpu.memory_space<smem>>, %arg2: memref<4xi32, #tpu.memory_space<smem>>) -> (i32, i32, i32) {
    %c0_i32 = arith.constant 0 : i32
    %c0_i32_0 = arith.constant 0 : i32
    %c0_i32_1 = arith.constant 0 : i32
    return %arg0, %c0_i32, %c0_i32_0 : i32, i32, i32
  }
  func.func @transform_3(%arg0: i32, %arg1: memref<4xi32, #tpu.memory_space<smem>>, %arg2: memref<4xi32, #tpu.memory_space<smem>>) -> (i32, i32, i32) {
    %c0_i32 = arith.constant 0 : i32
    %c0_i32_0 = arith.constant 0 : i32
    %c0_i32_1 = arith.constant 0 : i32
    return %arg0, %c0_i32, %c0_i32_0 : i32, i32, i32
  }
}

</mosaic_0001>

<llo_original>
// kernel: custom_ctc_loss.1
$region0: #{custom_ctc_loss.1}
  #allocation0 [shape = 'u32[]', space=smem, size = 0x4, offset = 0x4, fixed_abs, tag = 'smem constant byte address 0x4 - core index']
  #allocation1 [shape = 'u32[144,128]{1,0:T(1,128)}', space=vmem, size = 0x12000, scoped, tag = 'internal scratch']
  #allocation2 [shape = 'f32[16,128]{1,0:T(8,128)}', space=vmem, size = 0x2000, scoped, tag = 'scratch operand']
  #allocation3 [shape = 's32[1]{0}', space=sflag, size = 0x4, scoped, tag = 'scoped memory for custom_ctc_loss.1']
  #allocation4 [shape = 'u8[512]{0}', space=smem, size = 0x200, scoped, tag = 'prefetched SMEM operand 0']
  #allocation5 [shape = 'u8[512]{0}', space=smem, size = 0x200, scoped, tag = 'prefetched SMEM operand 1']
  %s0 = inlined_call_operand.vmem [shape: s32[4], index: 0, kind: input, shape index: {}]
  %s1 = inlined_call_operand.vmem [shape: s32[4], index: 1, kind: input, shape index: {}]
  %s2 = inlined_call_operand.vmem [shape: f32[4,16,128], index: 2, kind: input, shape index: {}]
  %s3 = inlined_call_operand.vmem [shape: f32[4,128,128], index: 3, kind: input, shape index: {}]
  %s4 = inlined_call_operand.vmem [shape: f32[4,1,128], index: 4, kind: input, shape index: {}]
  %s5 = inlined_call_operand.vmem [shape: f32[4,1,128], index: 5, kind: output, shape index: {}]
  %s6 = sld [smem:[#allocation0]]
  $region52: #{custom_ctc_loss.1} parent=0
    _
  %s8 = ssub.s32 1, %s6
  %s9 = scalar_select 0, %s8, %s6
  %s10 = sshll.u32 %s0, 4
  %s11 = int_to_ptr.vmem [resolvable:$true] %s10
  %13 = dma.vmem_to_smem %s11, 16, [#allocation4], [#allocation3]
  %s14 = sshll.u32 %s1, 4
  %s15 = int_to_ptr.vmem [resolvable:$true] %s14
  %17 = dma.vmem_to_smem %s15, 16, [#allocation5], [#allocation3]
  %18 = dma.done [#allocation3], 32
  %19 = sfence
  loop: start=0, step=1, limit=6
  $region2: #{custom_ctc_loss.1} parent=0 // loop_pre_header
    _
  $region3: #{custom_ctc_loss.1} parent=0 // loop_header
    %s21 = sphi 0, %s25
    %p22 = scmp.ge.s32.totalorder %s21, 6
    %s31 = sphi 0, %s33
    %s34 = sphi 0, %s31
    %s35 = sphi 0, %s34
    %s51 = sphi 0, %s35
    %s57 = sphi 0, %s59
    %s60 = sphi 0, %s57
    %s61 = sphi 0, %s60
    %s77 = sphi 0, %s61
    %s83 = sphi 0, %s85
    %s86 = sphi 0, %s83
    %s87 = sphi 0, %s86
    %s103 = sphi 0, %s87
    %s109 = sphi 0, %s111
    %s112 = sphi 0, %s109
    %s113 = sphi 0, %s112
    %s129 = sphi 0, %s113
  $region4: #{custom_ctc_loss.1} parent=0 // loop_header_branch
    %24 = sbr.rel (%p22) target = $region8
  $region5: #{custom_ctc_loss.1} parent=0 // loop_body
    %s26 = ssub.s32 %s21, 1
    %s27 = ssub.s32 %s21, 2
    %s28 = sadd.s32 %s21, 1
    %s29 = ssub.s32 %s21, %s28
    %p30 = scmp.eq.s32.totalorder %s29, 0
    %s32 = sadd.s32 %s31, 1
    %s33 = scalar_select %p30, %s31, %s32
    %p36 = pneg %p30
    %p37 = scmp.eq.s32.totalorder %s21, 3
    %p38 = por %p36, %p37
    %p39 = scmp.ne.s32.totalorder %s31, %s34
    %p40 = scmp.eq.s32.totalorder %s21, 0
    %p41 = por %p39, %p40
    %p42 = scmp.ne.s32.totalorder %s31, %s34
    %p43 = scmp.eq.s32.totalorder %s26, 3
    %p44 = por %p42, %p43
    %p45 = scmp.ne.s32.totalorder %s34, %s35
    %p46 = scmp.eq.s32.totalorder %s26, 0
    %p47 = por %p45, %p46
    %p48 = scmp.ne.s32.totalorder %s34, %s35
    %p49 = scmp.eq.s32.totalorder %s27, 3
    %p50 = por %p48, %p49
    %p52 = scmp.ne.s32.totalorder %s35, %s51
    %p53 = scmp.eq.s32.totalorder %s27, 0
    %p54 = por %p52, %p53
    %s55 = ssub.s32 %s21, %s28
    %p56 = scmp.eq.s32.totalorder %s55, 0
    %s58 = sadd.s32 %s57, 1
    %s59 = scalar_select %p56, %s57, %s58
    %p62 = pneg %p56
    %p63 = scmp.eq.s32.totalorder %s21, 3
    %p64 = por %p62, %p63
    %p65 = scmp.ne.s32.totalorder %s57, %s60
    %p66 = scmp.eq.s32.totalorder %s21, 0
    %p67 = por %p65, %p66
    %p68 = scmp.ne.s32.totalorder %s57, %s60
    %p69 = scmp.eq.s32.totalorder %s26, 3
    %p70 = por %p68, %p69
    %p71 = scmp.ne.s32.totalorder %s60, %s61
    %p72 = scmp.eq.s32.totalorder %s26, 0
    %p73 = por %p71, %p72
    %p74 = scmp.ne.s32.totalorder %s60, %s61
    %p75 = scmp.eq.s32.totalorder %s27, 3
    %p76 = por %p74, %p75
    %p78 = scmp.ne.s32.totalorder %s61, %s77
    %p79 = scmp.eq.s32.totalorder %s27, 0
    %p80 = por %p78, %p79
    %s81 = ssub.s32 %s21, %s28
    %p82 = scmp.eq.s32.totalorder %s81, 0
    %s84 = sadd.s32 %s83, 1
    %s85 = scalar_select %p82, %s83, %s84
    %p88 = pneg %p82
    %p89 = scmp.eq.s32.totalorder %s21, 3
    %p90 = por %p88, %p89
    %p91 = scmp.ne.s32.totalorder %s83, %s86
    %p92 = scmp.eq.s32.totalorder %s21, 0
    %p93 = por %p91, %p92
    %p94 = scmp.ne.s32.totalorder %s83, %s86
    %p95 = scmp.eq.s32.totalorder %s26, 3
    %p96 = por %p94, %p95
    %p97 = scmp.ne.s32.totalorder %s86, %s87
    %p98 = scmp.eq.s32.totalorder %s26, 0
    %p99 = por %p97, %p98
    %p100 = scmp.ne.s32.totalorder %s86, %s87
    %p101 = scmp.eq.s32.totalorder %s27, 3
    %p102 = por %p100, %p101
    %p104 = scmp.ne.s32.totalorder %s87, %s103
    %p105 = scmp.eq.s32.totalorder %s27, 0
    %p106 = por %p104, %p105
    %s107 = ssub.s32 %s21, %s28
    %p108 = scmp.eq.s32.totalorder %s107, 0
    %s110 = sadd.s32 %s109, 1
    %s111 = scalar_select %p108, %s109, %s110
    %p114 = pneg %p108
    %p115 = scmp.eq.s32.totalorder %s21, 3
    %p116 = por %p114, %p115
    %p117 = scmp.ne.s32.totalorder %s109, %s112
    %p118 = scmp.eq.s32.totalorder %s21, 0
    %p119 = por %p117, %p118
    %p120 = scmp.ne.s32.totalorder %s109, %s112
    %p121 = scmp.eq.s32.totalorder %s26, 3
    %p122 = por %p120, %p121
    %p123 = scmp.ne.s32.totalorder %s112, %s113
    %p124 = scmp.eq.s32.totalorder %s26, 0
    %p125 = por %p123, %p124
    %p126 = scmp.ne.s32.totalorder %s112, %s113
    %p127 = scmp.eq.s32.totalorder %s27, 3
    %p128 = por %p126, %p127
    %p130 = scmp.ne.s32.totalorder %s113, %s129
    %p131 = scmp.eq.s32.totalorder %s27, 0
    %p132 = por %p130, %p131
    %p133 = scmp.le.s32.totalorder 1, %s21
    %p134 = scmp.lt.s32.totalorder %s21, 5
    %p135 = pnand %p133, %p134
    %p136 = pneg %p135
    // Predicated region
    $region9: #{custom_ctc_loss.1} parent=5 // pred_check
      _
    $region10: #{custom_ctc_loss.1} parent=5 // pred_check_branch
      %138 = sbr.rel (%p135) target = $region12
    $region11: #{custom_ctc_loss.1} parent=5 // pred_region
      %s139 = ssub.s32 %s21, 1
    $region12: #{custom_ctc_loss.1} parent=5 // pred_fallthru
      _
    %p140 = scmp.lt.s32.totalorder %s21, 4
    // Predicated region
    $region13: #{custom_ctc_loss.1} parent=5 // pred_check
      %p141 = pneg %p140
    $region14: #{custom_ctc_loss.1} parent=5 // pred_check_branch
      %143 = sbr.rel (%p141) target = $region16
    $region15: #{custom_ctc_loss.1} parent=5 // pred_region
      // Predicated region
      $region17: #{custom_ctc_loss.1} parent=15 // pred_check
        %p144 = pneg %p41
      $region18: #{custom_ctc_loss.1} parent=15 // pred_check_branch
        %146 = sbr.rel (%p144) target = $region20
      $region19: #{custom_ctc_loss.1} parent=15 // pred_region
        %p147 = scmp.lt.s32.totalorder %s21, 3
        %s148 = scalar_select %p147, %s21, 3
        %s149 = smul.addr %s148, 2
        %s150 = smul.addr %s149, 8
        %s151 = scalar_lea.vmem %s2, %s150
      $region20: #{custom_ctc_loss.1} parent=15 // pred_fallthru
        _
      // Predicated region
      $region21: #{custom_ctc_loss.1} parent=15 // pred_check
        %p152 = pneg %p67
      $region22: #{custom_ctc_loss.1} parent=15 // pred_check_branch
        %154 = sbr.rel (%p152) target = $region24
      $region23: #{custom_ctc_loss.1} parent=15 // pred_region
        %p155 = scmp.lt.s32.totalorder %s21, 3
        %s156 = scalar_select %p155, %s21, 3
        %s157 = smul.addr %s156, 16
        %s158 = smul.addr %s157, 8
        %s159 = scalar_lea.vmem %s3, %s158
      $region24: #{custom_ctc_loss.1} parent=15 // pred_fallthru
        _
      // Predicated region
      $region25: #{custom_ctc_loss.1} parent=15 // pred_check
        %p160 = pneg %p93
      $region26: #{custom_ctc_loss.1} parent=15 // pred_check_branch
        %162 = sbr.rel (%p160) target = $region28
      $region27: #{custom_ctc_loss.1} parent=15 // pred_region
        %p163 = scmp.lt.s32.totalorder %s21, 3
        %s164 = scalar_select %p163, %s21, 3
        %s165 = scalar_lea.vmem %s4, %s164
      $region28: #{custom_ctc_loss.1} parent=15 // pred_fallthru
        _
    $region16: #{custom_ctc_loss.1} parent=5 // pred_fallthru
      _
    %p166 = scmp.le.s32.totalorder 1, %s21
    %p167 = scmp.lt.s32.totalorder %s21, 5
    %p168 = pnand %p166, %p167
    %p169 = pneg %p168
    // Predicated region
    $region29: #{custom_ctc_loss.1} parent=5 // pred_check
      _
    $region30: #{custom_ctc_loss.1} parent=5 // pred_check_branch
      %171 = sbr.rel (%p168) target = $region32
    $region31: #{custom_ctc_loss.1} parent=5 // pred_region
      %s172 = ssub.s32 %s21, 1
      %p173 = scmp.lt.s32.totalorder %s26, 3
      %s174 = scalar_select %p173, %s26, 3
      %s175 = smul.addr %s174, 2
      %s176 = smul.addr %s175, 8
      %s177 = scalar_lea.vmem %s2, %s176
      %p178 = pneg %p47
      %p179 = pneg %p44
      %p180 = scmp.lt.s32.totalorder %s26, 3
      %s181 = scalar_select %p180, %s26, 3
      %s182 = smul.addr %s181, 16
      %s183 = smul.addr %s182, 8
      %s184 = scalar_lea.vmem %s3, %s183
      %p185 = pneg %p73
      %p186 = pneg %p70
      %p187 = scmp.lt.s32.totalorder %s26, 3
      %s188 = scalar_select %p187, %s26, 3
      %s189 = scalar_lea.vmem %s4, %s188
      %p190 = pneg %p99
      %p191 = pneg %p96
      %p192 = pneg %p125
      %p193 = pneg %p122
      %p194 = scmp.lt.s32.totalorder %s26, 3
      %s195 = scalar_select %p194, %s26, 3
      %s196 = scalar_lea.vmem %s5, %s195
      %p197 = scmp.lt.s32.totalorder %s26, 3
      %s198 = scalar_select %p197, %s26, 3
      %s199 = smul.addr %s198, 2
      %s200 = smul.addr %s199, 8
      %s201 = scalar_lea.vmem %s2, %s200
      %p202 = scmp.lt.s32.totalorder %s26, 3
      %s203 = scalar_select %p202, %s26, 3
      %s204 = smul.addr %s203, 16
      %s205 = smul.addr %s204, 8
      %s206 = scalar_lea.vmem %s3, %s205
      %p207 = scmp.lt.s32.totalorder %s26, 3
      %s208 = scalar_select %p207, %s26, 3
      %s209 = scalar_lea.vmem %s4, %s208
      %p210 = scmp.lt.s32.totalorder %s26, 3
      %s211 = scalar_select %p210, %s26, 3
      %s212 = scalar_lea.vmem %s5, %s211
      %s213 = sld [smem:[#allocation4 + %s26]]
      %s214 = sld [smem:[#allocation5 + %s26]]
      %v215 = vld [vmem:[%s201] sm:$0xff]
      %v216 = vld [vmem:[%s201 + $0x8] sm:$0xff]
      %v217 = vld [vmem:[%s206] sm:$0xff]
      %v218 = vld [vmem:[%s206 + $0x8] sm:$0xff]
      %v219 = vld [vmem:[%s206 + $0x10] sm:$0xff]
      %v220 = vld [vmem:[%s206 + $0x18] sm:$0xff]
      %v221 = vld [vmem:[%s206 + $0x20] sm:$0xff]
      %v222 = vld [vmem:[%s206 + $0x28] sm:$0xff]
      %v223 = vld [vmem:[%s206 + $0x30] sm:$0xff]
      %v224 = vld [vmem:[%s206 + $0x38] sm:$0xff]
      %v225 = vld [vmem:[%s206 + $0x40] sm:$0xff]
      %v226 = vld [vmem:[%s206 + $0x48] sm:$0xff]
      %v227 = vld [vmem:[%s206 + $0x50] sm:$0xff]
      %v228 = vld [vmem:[%s206 + $0x58] sm:$0xff]
      %v229 = vld [vmem:[%s206 + $0x60] sm:$0xff]
      %v230 = vld [vmem:[%s206 + $0x68] sm:$0xff]
      %v231 = vld [vmem:[%s206 + $0x70] sm:$0xff]
      %v232 = vld [vmem:[%s206 + $0x78] sm:$0xff]
      %233 = vmatprep.subr.mxu0 0.0
      %234 = vmatpush1.msra.mxu0 %v232
      %235 = vmatprep.subr.mxu0 0.0
      %236 = vmatpush1.msra.mxu0 %v231
      %237 = vmatprep.subr.mxu0 0.0
      %238 = vmatpush1.msra.mxu0 %v230
      %239 = vmatprep.subr.mxu0 0.0
      %240 = vmatpush1.msra.mxu0 %v229
      %241 = vmatprep.subr.mxu0 0.0
      %242 = vmatpush1.msra.mxu0 %v228
      %243 = vmatprep.subr.mxu0 0.0
      %244 = vmatpush1.msra.mxu0 %v227
      %245 = vmatprep.subr.mxu0 0.0
      %246 = vmatpush1.msra.mxu0 %v226
      %247 = vmatprep.subr.mxu0 0.0
      %248 = vmatpush1.msra.mxu0 %v225
      %249 = vmatprep.subr.mxu0 0.0
      %250 = vmatpush1.msra.mxu0 %v224
      %251 = vmatprep.subr.mxu0 0.0
      %252 = vmatpush1.msra.mxu0 %v223
      %253 = vmatprep.subr.mxu0 0.0
      %254 = vmatpush1.msra.mxu0 %v222
      %255 = vmatprep.subr.mxu0 0.0
      %256 = vmatpush1.msra.mxu0 %v221
      %257 = vmatprep.subr.mxu0 0.0
      %258 = vmatpush1.msra.mxu0 %v220
      %259 = vmatprep.subr.mxu0 0.0
      %260 = vmatpush1.msra.mxu0 %v219
      %261 = vmatprep.subr.mxu0 0.0
      %262 = vmatpush1.msra.mxu0 %v218
      %263 = vmatprep.subr.mxu0 0.0
      %264 = vmatpush1.msra.mxu0 %v217
      %265 = vmatprep.subr.mxu0 0.0
      %266 = vmatpush2.msra.mxu0 0.0
      %267 = vmatprep.subr.mxu0 0.0
      %268 = vmatpush2.msra.mxu0 0.0
      %269 = vmatprep.subr.mxu0 0.0
      %270 = vmatpush2.msra.mxu0 0.0
      %271 = vmatprep.subr.mxu0 0.0
      %272 = vmatpush2.msra.mxu0 0.0
      %273 = vmatprep.subr.mxu0 0.0
      %274 = vmatpush2.msra.mxu0 0.0
      %275 = vmatprep.subr.mxu0 0.0
      %276 = vmatpush2.msra.mxu0 0.0
      %277 = vmatprep.subr.mxu0 0.0
      %278 = vmatpush2.msra.mxu0 0.0
      %279 = vmatprep.subr.mxu0 0.0
      %280 = vmatpush2.msra.mxu0 0.0
      %281 = vmatprep.subr.mxu0 0.0
      %282 = vmatpush2.msra.mxu0 0.0
      %283 = vmatprep.subr.mxu0 0.0
      %284 = vmatpush2.msra.mxu0 0.0
      %285 = vmatprep.subr.mxu0 0.0
      %286 = vmatpush2.msra.mxu0 0.0
      %287 = vmatprep.subr.mxu0 0.0
      %288 = vmatpush2.msra.mxu0 0.0
      %289 = vmatprep.subr.mxu0 0.0
      %290 = vmatpush2.msra.mxu0 0.0
      %291 = vmatprep.subr.mxu0 0.0
      %292 = vmatpush2.msra.mxu0 0.0
      %293 = vmatprep.subr.mxu0 0.0
      %294 = vmatpush2.msra.mxu0 0.0
      %295 = vmatprep.subr.mxu0 0.0
      %296 = vmatpush2.msra.mxu0 0.0
      %297 = vmatprep.mubr.f32.mxu0 0.0
      %298 = vmatmul.mubr.f32.gmra.mxu0 %v215
      %v299 = vpop.f32.mrf.mxu0
      %v300 = vadd.f32 0.0, %v299
      %v301 = vpop.f32.mrf.mxu0
      %302 = vmatprep.mubr.f32.mxu0 0.0
      %303 = vmatmul.mubr.f32.gmra.mxu0 %v216
      %v304 = vpop.f32.mrf.mxu0
      %v305 = vadd.f32 0.0, %v304
      %v306 = vpop.f32.mrf.mxu0
      %307 = vdwg.mxu0
      %308 = vst [vmem:[#allocation2] sm:$0xff] %v300
      %309 = vst [vmem:[#allocation2 + $0x8] sm:$0xff] %v305
      %v310 = vlaneseq
      %v311 = vand.u32 %v310, 127
      %v312 = vld [vmem:[%s209] sm:$0x1]
      %vm313 = vcmp.gt.f32.partialorder %v312, 0.5
      %p314 = scmp.gt.s32.totalorder %s214, 0
      %s315 = scalar_select %p314, 2, 1
      %v316 = vstv %s315
      %vm317 = vcmp.lt.s32.totalorder %v311, %v316
      %v318 = vld [vmem:[#allocation2] sm:$0x1]
      %v319 = vsel %vm317, %v318, -1e+30
      // While loop
      $region33: #{custom_ctc_loss.1} parent=31 // loop_pre_header
        _
      $region34: #{custom_ctc_loss.1} parent=31 // loop_header
        %s321 = sphi 1, %s323
        %p322 = scmp.ge.s32.totalorder %s321, %s213
        %v326 = vphi %v319, %v357
      $region35: #{custom_ctc_loss.1} parent=31 // loop_header_branch
        %325 = sbr.rel (%p322) target = $region39
      $region36: #{custom_ctc_loss.1} parent=31 // loop_body
        %vm327 = vcmp.ge.s32.totalorder %v311, 1
        %328 = vrot.lane.b32.xlu0 %v326, 1
        %v329 = vpop.permute.xlu0 %328
        %v330 = vsel %vm327, %v329, -1e+30
        %vm331 = vcmp.ge.s32.totalorder %v311, 2
        %vm332 = vmand %vm331, %vm313
        %333 = vrot.lane.b32.xlu0 %v326, 2
        %v334 = vpop.permute.xlu0 %333
        %v335 = vsel %vm332, %v334, -1e+30
        %s336 = scalar_lea.vmem [#allocation2], %s321
        %v337 = vld [vmem:[%s336] sm:$0x1]
        %v338 = vmax.f32 %v326, %v330
        %v339 = vmax.f32 %v338, %v335
        %v340 = vsub.f32 %v326, %v339
        %v341 = vmax.f32 %v340, -80.0
        %v342 = vmul.f32 %v341, 1.442695
        %v343 = vpow.pop %v342
        %v344 = vsub.f32 %v330, %v339
        %v345 = vmax.f32 %v344, -80.0
        %v346 = vmul.f32 %v345, 1.442695
        %v347 = vpow.pop %v346
        %v348 = vadd.f32 %v343, %v347
        %v349 = vsub.f32 %v335, %v339
        %v350 = vmax.f32 %v349, -80.0
        %v351 = vmul.f32 %v350, 1.442695
        %v352 = vpow.pop %v351
        %v353 = vadd.f32 %v348, %v352
        %v354 = vlog2.pop %v353
        %v355 = vmul.f32 %v354, 0.6931472
        %v356 = vadd.f32 %v339, %v355
        %v357 = vadd.f32 %v337, %v356
      $region37: #{custom_ctc_loss.1} parent=31 // loop_footer
        %s323 = sadd.s32 %s321, 1
      $region38: #{custom_ctc_loss.1} parent=31 // loop_footer_branch
        %320 = sbr.rel target = $region34
      $region39: #{custom_ctc_loss.1} parent=31 // loop_exit
        _
      %s358 = smul.u32 %s214, 2
      %v359 = vstv %s358
      %vm360 = vcmp.eq.s32.totalorder %v311, %v359
      %s361 = ssub.s32 %s358, 1
      %v362 = vstv %s361
      %vm363 = vcmp.eq.s32.totalorder %v311, %v362
      %s364 = scalar_select %p314, 1, 0
      %v365 = vstv %s364
      %vm366 = vcmp.eq.s32.totalorder %v365, 1
      %vm367 = vmand %vm363, %vm366
      %vm368 = vmor %vm360, %vm367
      %v369 = vsel %vm368, %v326, -1e+30
      %vm370 = vcmask 1040384
      %v371 = vsel %vm370, %v369, -inf
      %372 = vmax.xlane.f32.xlu0 %v371
      %v373 = vpop.xlane.xlu0 %372
      %v374 = vsub.f32 %v369, %v373
      %v375 = vmax.f32 %v374, -80.0
      %v376 = vmul.f32 %v375, 1.442695
      %v377 = vpow.pop %v376
      %v378 = vsel %vm370, %v377, 0.0
      %379 = vadd.xlane.f32.xlu0 %v378
      %v380 = vpop.xlane.xlu0 %379
      %v381 = vlog2.pop %v380
      %v382 = vmul.f32 %v381, 0.6931472
      %v383 = vadd.f32 %v373, %v382
      %v384 = vsub.f32 0.0, %v383
      %385 = vst [vmem:[%s212] sm:$0x1] %v384
      %p386 = scmp.lt.s32.totalorder %s26, 3
      %s387 = scalar_select %p386, %s26, 3
      %s388 = scalar_lea.vmem %s5, %s387
      // Predicated region
      $region40: #{custom_ctc_loss.1} parent=31 // pred_check
        %p389 = pneg %p122
      $region41: #{custom_ctc_loss.1} parent=31 // pred_check_branch
        %391 = sbr.rel (%p389) target = $region43
      $region42: #{custom_ctc_loss.1} parent=31 // pred_region
        _
      $region43: #{custom_ctc_loss.1} parent=31 // pred_fallthru
        _
    $region32: #{custom_ctc_loss.1} parent=5 // pred_fallthru
      _
    %p392 = scmp.le.s32.totalorder 2, %s21
    // Predicated region
    $region44: #{custom_ctc_loss.1} parent=5 // pred_check
      %p393 = pneg %p392
    $region45: #{custom_ctc_loss.1} parent=5 // pred_check_branch
      %395 = sbr.rel (%p393) target = $region47
    $region46: #{custom_ctc_loss.1} parent=5 // pred_region
      %s396 = ssub.s32 %s21, 2
      // Predicated region
      $region48: #{custom_ctc_loss.1} parent=46 // pred_check
        %p397 = pneg %p128
      $region49: #{custom_ctc_loss.1} parent=46 // pred_check_branch
        %399 = sbr.rel (%p397) target = $region51
      $region50: #{custom_ctc_loss.1} parent=46 // pred_region
        %p400 = scmp.lt.s32.totalorder %s27, 3
        %s401 = scalar_select %p400, %s27, 3
        %s402 = scalar_lea.vmem %s5, %s401
      $region51: #{custom_ctc_loss.1} parent=46 // pred_fallthru
        _
    $region47: #{custom_ctc_loss.1} parent=5 // pred_fallthru
      _
  $region6: #{custom_ctc_loss.1} parent=0 // loop_footer
    %s25 = sadd.s32 1, %s21
  $region7: #{custom_ctc_loss.1} parent=0 // loop_footer_branch
    %20 = sbr.rel target = $region3
  $region8: #{custom_ctc_loss.1} parent=0 // loop_exit
    _

</llo_original>
